<compile_context>
chip_gen: v5e
topology: v5e:2x2
jax: 0.10.0
libtpu: 0.0.40
codegen_flags: <defaults>
</compile_context>

<pallas_src>
import functools

import jax
import jax.numpy as jnp
from jax.experimental import pallas as pl
from jax.experimental.pallas import tpu as pltpu


# ----------------------------------------------------------------------------
# Kernel
# ----------------------------------------------------------------------------
def _tgc_kernel(x_ref, m_ref, w_ref, b_ref, o_ref, *, mode, exp_dtype):
    # x_ref: [Bblk, N, Din] bf16   m_ref: [Bblk, N, F] f32
    # w_ref: [Din, Dout]    bf16   b_ref: [1, Dout]    f32
    # o_ref: [Bblk, 1, N*Dout]     (lane-dense output slab)
    bblk, n, din = x_ref.shape
    dout = w_ref.shape[1]

    # --- similarity logits: s[b,i,j] = sum_f M[b,i,f] * M[b,j,f] -------------
    # f32 operands (softmax amplifies operand rounding); contraction over the
    # last dims of both operands -> no in-kernel transpose of M.
    m = m_ref[...]
    s = jax.lax.dot_general(
        m, m,
        dimension_numbers=(((2,), (2,)), ((0,), (0,))),
        preferred_element_type=jnp.float32)                   # [Bblk, N, N] f32
    s = jnp.maximum(s, 0.0)                                   # relu

    # --- unnormalized softmax weights (normalization deferred) ---------------
    s_max = jnp.max(s, axis=-1, keepdims=True)                # [Bblk, N, 1]
    # bf16 exp on chips with a bf16 EUP (v6e/v7x); f32 elsewhere (v5e).
    e = jnp.exp((s - s_max).astype(exp_dtype))                # [Bblk, N, N]
    denom = jnp.sum(e.astype(jnp.float32), axis=-1, keepdims=True)
    e_bf = e.astype(jnp.bfloat16)                             # single MXU-ready copy

    # --- Xw = X @ W : flatten batch to fill MXU rows --------------------------
    x2 = x_ref[...].reshape(bblk * n, din)                    # leading-dim merge
    xw2 = jnp.dot(x2, w_ref[...],
                  preferred_element_type=jnp.float32)         # [Bblk*N, Dout]
    xw = xw2.reshape(bblk, n, dout)                           # [Bblk, N, Dout]

    # --- acc = e @ Xw, then row-scale by 1/denom  => sim @ Xw ----------------
    acc = jax.lax.dot_general(
        e_bf, xw.astype(jnp.bfloat16),
        dimension_numbers=(((2,), (1,)), ((0,), (0,))),
        preferred_element_type=jnp.float32)                   # [Bblk, N, Dout]
    sim_xw = acc * pl.reciprocal(denom, approx=True)

    # --- (I +/- sim) @ Xw done algebraically (no materialized identity) ------
    if mode == 'add':
        z = xw + sim_xw
    else:  # 'subtract'
        z = xw - sim_xw
    z = z + b_ref[...].astype(jnp.float32)                    # broadcast bias

    # TODO(synk): training-mode dropout (stateful PRNG mask) not applied;
    # this implements inference-mode dropout (identity), matching eval().

    # Lane-dense store: last dim N*Dout (>=128 at typical shapes) instead of
    # a masked Dout-lane store; the relayout rides the XLU slot (has slack).
    o_ref[...] = z.reshape(bblk, 1, n * dout).astype(o_ref.dtype)


# ----------------------------------------------------------------------------
# Host-side helpers
# ----------------------------------------------------------------------------
def _eup_supports_bf16():
    """True on chips with a bf16 EUP/VPU (v6e, v7x); conservative elsewhere."""
    try:
        kind = jax.devices()[0].device_kind.lower()
    except Exception:
        return False
    return ('v6' in kind) or ('v7' in kind)


def _vmem_capacity_bytes():
    try:
        return int(pltpu.get_tpu_info().vmem_capacity_bytes)
    except Exception:
        return 64 * 1024 * 1024   # conservative default (v7x per-TC)


def _footprint_bytes(bblk, N, Din, F, Dout, exp_bytes):
    """Rough per-step VMEM footprint for a given batch block."""
    # Double-buffered pipeline tiles (inputs + output).
    tiles = 2 * (bblk * N * Din * 2          # X (bf16)
                 + bblk * N * F * 4          # M (f32)
                 + bblk * N * Dout * 4       # output slab (f32)
                 + Din * Dout * 2            # W (bf16)
                 + Dout * 4)                 # bias
    # Live in-kernel temporaries (dominated by the two [Bblk,N,N] arrays).
    temps = (bblk * N * N * 4                # s (f32)
             + bblk * N * N * exp_bytes      # e
             + bblk * N * N * 2              # bf16 copy fed to the MXU
             + 3 * bblk * N * Dout * 4)      # xw / acc / z
    return tiles + temps


def _pick_batch_block(B, N, Din, F, Dout, exp_dtype, max_bblk=64):
    """Largest VMEM-fitting Bblk, capped so the grid has >=2 steps when B>=2."""
    exp_bytes = 2 if exp_dtype == jnp.bfloat16 else 4
    vmem_cap = _vmem_capacity_bytes()
    budget = int(vmem_cap * 0.6)
    cap = max(1, min(max_bblk, (-(-B // 2)) if B >= 2 else B))
    bblk = 1
    for cand in range(cap, 0, -1):
        if _footprint_bytes(cand, N, Din, F, Dout, exp_bytes) <= budget:
            bblk = cand
            break
    est = _footprint_bytes(bblk, N, Din, F, Dout, exp_bytes)
    vmem_limit = int(min(vmem_cap * 0.9, max(32 * 1024 * 1024, 2 * est)))
    return bblk, vmem_limit


# ----------------------------------------------------------------------------
# Public wrapper
# ----------------------------------------------------------------------------
def time_graph_convolution(X, M, weight, bias, *, mode='add'):
    """X: [B, N, Din], M: [B, N, F], weight: [Din, Dout], bias: [Dout]."""
    if mode not in ('add', 'subtract'):
        raise ValueError(f"unsupported mode: {mode}")
    B, N, Din = X.shape
    F = M.shape[2]
    Dout = weight.shape[1]
    out_dtype = X.dtype

    exp_dtype = jnp.bfloat16 if _eup_supports_bf16() else jnp.float32
    bblk, vmem_limit = _pick_batch_block(B, N, Din, F, Dout, exp_dtype)

    # Pre-cast matmul operands in the wrapper (smaller DMAs, no per-step cast).
    x_bf = X.astype(jnp.bfloat16)
    m_f32 = M.astype(jnp.float32)
    w_bf = weight.astype(jnp.bfloat16)
    bias2d = bias.reshape(1, Dout).astype(jnp.float32)

    # Pad batch so every grid step processes a full tile (handles non-divisor B).
    n_blocks = -(-B // bblk)
    B_pad = n_blocks * bblk
    if B_pad != B:
        pad = ((0, B_pad - B), (0, 0), (0, 0))
        x_bf = jnp.pad(x_bf, pad)
        m_f32 = jnp.pad(m_f32, pad)

    kernel = functools.partial(_tgc_kernel, mode=mode, exp_dtype=exp_dtype)

    out = pl.pallas_call(
        kernel,
        out_shape=jax.ShapeDtypeStruct((B_pad, 1, N * Dout), out_dtype),
        grid_spec=pltpu.PrefetchScalarGridSpec(
            num_scalar_prefetch=0,
            grid=(n_blocks,),
            in_specs=[
                pl.BlockSpec((bblk, N, Din), lambda b: (b, 0, 0)),  # X (bf16)
                pl.BlockSpec((bblk, N, F), lambda b: (b, 0, 0)),    # M (f32)
                pl.BlockSpec((Din, Dout), lambda b: (0, 0)),        # W (shared)
                pl.BlockSpec((1, Dout), lambda b: (0, 0)),          # bias (shared)
            ],
            out_specs=pl.BlockSpec((bblk, 1, N * Dout), lambda b: (b, 0, 0)),
        ),
        compiler_params=pltpu.CompilerParams(
            dimension_semantics=("parallel",),
            vmem_limit_bytes=vmem_limit),
    )(x_bf, m_f32, w_bf, bias2d)

    return out[:B].reshape(B, N, Dout)


# ----------------------------------------------------------------------------
# Reference (pure JAX, mirrors the PyTorch module in eval mode)
# ----------------------------------------------------------------------------
def _reference(X, M, weight, bias, mode='add'):
    s = jnp.einsum('bnf,bmf->bnm', M, M)
    s = jax.nn.relu(s)
    sim = jax.nn.softmax(s, axis=-1)
    xw = jnp.einsum('bnd,de->bne', X, weight)
    eye = jnp.eye(X.shape[1], dtype=X.dtype)[None]
    g = eye + sim if mode == 'add' else eye - sim
    return jnp.einsum('bnm,bme->bne', g, xw) + bias


if __name__ == "__main__":
    key = jax.random.PRNGKey(0)
    B, N, Din, Dout, F = 2, 16, 32, 32, 8

    kx, km, kw = jax.random.split(key, 3)
    X = jax.random.normal(kx, (B, N, Din), dtype=jnp.float32)
    M = jax.random.normal(km, (B, N, F), dtype=jnp.float32)

    # Deterministic xavier_uniform for weight, zeros for bias (matches __init__).
    bound = (6.0 / (Din + Dout)) ** 0.5
    weight = jax.random.uniform(kw, (Din, Dout), dtype=jnp.float32,
                                minval=-bound, maxval=bound)
    bias = jnp.zeros((Dout,), dtype=jnp.float32)

    # Tolerances loosened vs pure-f32: X@W and e@Xw use bf16 operands (f32
    # accumulate), exp may run in bf16 (v6e/v7x), and the softmax scale uses
    # the approximate EUP reciprocal, so rows do not sum exactly to 1.
    for mode in ('add', 'subtract'):
        out = time_graph_convolution(X, M, weight, bias, mode=mode)
        out = jax.block_until_ready(out)
        ref = _reference(X, M, weight, bias, mode=mode)
        assert out.shape == (B, N, Dout)
        assert jnp.allclose(out, ref, atol=5e-2, rtol=5e-2), \
            f"mismatch vs reference (mode={mode})"

    print("KERNEL_OK")
</pallas_src>

<mosaic_0001>
module attributes {stable_mosaic.version = 11 : i64} {
  func.func @_tgc_kernel(%arg0: i32, %arg1: memref<1x16x32xbf16, #tpu.memory_space<vmem>>, %arg2: memref<1x16x8xf32, #tpu.memory_space<vmem>>, %arg3: memref<32x32xbf16, #tpu.memory_space<vmem>>, %arg4: memref<1x32xf32, #tpu.memory_space<vmem>>, %arg5: memref<1x1x512xf32, #tpu.memory_space<vmem>>) attributes {dimension_semantics = [#tpu.dimension_semantics<parallel>], iteration_bounds = array<i64: 2>, scalar_prefetch = 0 : i64, scratch_operands = 0 : i64, tpu.core_type = #tpu.core_type<tc>, window_params = [{transform_indices = @transform_0, window_bounds = array<i64: 1, 16, 32>}, {transform_indices = @transform_1, window_bounds = array<i64: 1, 16, 8>}, {pipeline_mode = #tpu.pipeline_mode<synchronous>, transform_indices = @transform_2, window_bounds = array<i64: 32, 32>}, {pipeline_mode = #tpu.pipeline_mode<synchronous>, transform_indices = @transform_3, window_bounds = array<i64: 1, 32>}, {transform_indices = @transform_4, window_bounds = array<i64: 1, 1, 512>}]} {
    %c0 = arith.constant 0 : index
    %c0_0 = arith.constant 0 : index
    %c0_1 = arith.constant 0 : index
    %0 = vector.load %arg2[%c0, %c0_0, %c0_1] : memref<1x16x8xf32, #tpu.memory_space<vmem>>, vector<1x16x8xf32>
    %cst = arith.constant dense<0.000000e+00> : vector<1x16x16xf32>
    %1 = tpu.matmul %0, %0, %cst {dimension_numbers = #tpu.dot_dimension_numbers<[2], [2], [1], [1], [0, 0, 0, 1, 1, 1], [0], [0]>} : vector<1x16x8xf32>, vector<1x16x8xf32>, vector<1x16x16xf32> -> vector<1x16x16xf32>
    %cst_2 = arith.constant 0.000000e+00 : f32
    %2 = vector.broadcast %cst_2 : f32 to vector<1x16x16xf32>
    %3 = arith.maximumf %1, %2 : vector<1x16x16xf32>
    %cst_3 = arith.constant dense<0xFF800000> : vector<1x16xf32>
    %4 = vector.multi_reduction <maximumf>, %3, %cst_3 [2] : vector<1x16x16xf32> to vector<1x16xf32>
    %5 = vector.shape_cast %4 : vector<1x16xf32> to vector<1x16x1xf32>
    %6 = vector.broadcast %5 : vector<1x16x1xf32> to vector<1x16x16xf32>
    %7 = arith.subf %3, %6 : vector<1x16x16xf32>
    %8 = math.exp %7 : vector<1x16x16xf32>
    %cst_4 = arith.constant dense<0.000000e+00> : vector<1x16xf32>
    %9 = vector.multi_reduction <add>, %8, %cst_4 [2] : vector<1x16x16xf32> to vector<1x16xf32>
    %10 = vector.shape_cast %9 : vector<1x16xf32> to vector<1x16x1xf32>
    %11 = arith.truncf %8 : vector<1x16x16xf32> to vector<1x16x16xbf16>
    %c0_5 = arith.constant 0 : index
    %c0_6 = arith.constant 0 : index
    %c0_7 = arith.constant 0 : index
    %12 = vector.load %arg1[%c0_5, %c0_6, %c0_7] : memref<1x16x32xbf16, #tpu.memory_space<vmem>>, vector<1x16x32xbf16>
    %13 = vector.shape_cast %12 : vector<1x16x32xbf16> to vector<16x32xbf16>
    %c0_8 = arith.constant 0 : index
    %c0_9 = arith.constant 0 : index
    %14 = vector.load %arg3[%c0_8, %c0_9] : memref<32x32xbf16, #tpu.memory_space<vmem>>, vector<32x32xbf16>
    %cst_10 = arith.constant dense<0.000000e+00> : vector<16x32xf32>
    %15 = tpu.matmul %13, %14, %cst_10 {dimension_numbers = #tpu.dot_dimension_numbers<[1], [0], [0], [1], [0, 0, 1, 1], [], []>} : vector<16x32xbf16>, vector<32x32xbf16>, vector<16x32xf32> -> vector<16x32xf32>
    %16 = vector.shape_cast %15 : vector<16x32xf32> to vector<1x16x32xf32>
    %17 = arith.truncf %16 : vector<1x16x32xf32> to vector<1x16x32xbf16>
    %cst_11 = arith.constant dense<0.000000e+00> : vector<1x16x32xf32>
    %18 = tpu.matmul %11, %17, %cst_11 {dimension_numbers = #tpu.dot_dimension_numbers<[2], [1], [1], [2], [0, 0, 0, 1, 1, 2], [0], [0]>} : vector<1x16x16xbf16>, vector<1x16x32xbf16>, vector<1x16x32xf32> -> vector<1x16x32xf32>
    %19 = tpu.reciprocal %10 {approx = true} : vector<1x16x1xf32> -> vector<1x16x1xf32>
    %20 = vector.broadcast %19 : vector<1x16x1xf32> to vector<1x16x32xf32>
    %21 = arith.mulf %18, %20 : vector<1x16x32xf32>
    %22 = arith.addf %16, %21 : vector<1x16x32xf32>
    %c0_12 = arith.constant 0 : index
    %c0_13 = arith.constant 0 : index
    %23 = vector.load %arg4[%c0_12, %c0_13] : memref<1x32xf32, #tpu.memory_space<vmem>>, vector<1x32xf32>
    %24 = vector.shape_cast %23 : vector<1x32xf32> to vector<1x1x32xf32>
    %25 = vector.broadcast %24 : vector<1x1x32xf32> to vector<1x16x32xf32>
    %26 = arith.addf %22, %25 : vector<1x16x32xf32>
    %27 = vector.shape_cast %26 : vector<1x16x32xf32> to vector<1x1x512xf32>
    %c0_14 = arith.constant 0 : index
    %c0_15 = arith.constant 0 : index
    %c0_16 = arith.constant 0 : index
    %28 = vector.load %arg5[%c0_14, %c0_15, %c0_16] : memref<1x1x512xf32, #tpu.memory_space<vmem>>, vector<1x1x512xf32>
    tpu.vector_store %arg5[%c0_14, %c0_15, %c0_16], %27 {strides = array<i32>} : memref<1x1x512xf32, #tpu.memory_space<vmem>>, vector<1x1x512xf32>,
    return
  }
  func.func @transform_0(%arg0: i32) -> (i32, i32, i32) {
    %c0_i32 = arith.constant 0 : i32
    %c0_i32_0 = arith.constant 0 : i32
    %c0_i32_1 = arith.constant 0 : i32
    return %arg0, %c0_i32, %c0_i32_0 : i32, i32, i32
  }
  func.func @transform_1(%arg0: i32) -> (i32, i32, i32) {
    %c0_i32 = arith.constant 0 : i32
    %c0_i32_0 = arith.constant 0 : i32
    %c0_i32_1 = arith.constant 0 : i32
    return %arg0, %c0_i32, %c0_i32_0 : i32, i32, i32
  }
  func.func @transform_2(%arg0: i32) -> (i32, i32) {
    %c0_i32 = arith.constant 0 : i32
    %c0_i32_0 = arith.constant 0 : i32
    %c0_i32_1 = arith.constant 0 : i32
    return %c0_i32, %c0_i32_0 : i32, i32
  }
  func.func @transform_3(%arg0: i32) -> (i32, i32) {
    %c0_i32 = arith.constant 0 : i32
    %c0_i32_0 = arith.constant 0 : i32
    %c0_i32_1 = arith.constant 0 : i32
    return %c0_i32, %c0_i32_0 : i32, i32
  }
  func.func @transform_4(%arg0: i32) -> (i32, i32, i32) {
    %c0_i32 = arith.constant 0 : i32
    %c0_i32_0 = arith.constant 0 : i32
    %c0_i32_1 = arith.constant 0 : i32
    return %arg0, %c0_i32, %c0_i32_0 : i32, i32, i32
  }
}

</mosaic_0001>

<llo_original>
// kernel: tpu_custom_call.1
$region0: #{tpu_custom_call.1}
  #allocation0 [shape = 'u32[]', space=smem, size = 0x4, offset = 0x4, fixed_abs, tag = 'smem constant byte address 0x4 - core index']
  #allocation1 [shape = 'u32[72,128]{1,0:T(1,128)}', space=vmem, size = 0x9000, scoped, tag = 'internal scratch']
  %s0 = inlined_call_operand.vmem [shape: bf16[2,16,32], index: 0, kind: input, shape index: {}]
  %s1 = inlined_call_operand.vmem [shape: f32[2,16,8], index: 1, kind: input, shape index: {}]
  %s2 = inlined_call_operand.vmem [shape: bf16[32,32], index: 2, kind: input, shape index: {}]
  %s3 = inlined_call_operand.vmem [shape: f32[1,32], index: 3, kind: input, shape index: {}]
  %s4 = inlined_call_operand.hbm [shape: f32[2,1,512], index: 4, kind: output, shape index: {}]
  %s5 = sld [smem:[#allocation0]]
  $region49: #{tpu_custom_call.1} parent=0
    _
  %s7 = ssub.s32 1, %s5
  %s8 = scalar_select 0, %s7, %s5
  $region1: #{tpu_custom_call.1} parent=0
    #allocation2 [shape = 'u8[4096]{0}', space=vmem, size = 0x1000, scoped, tag = 'output window, operand 0']
    #allocation3 [shape = 's32[2]{0}', space=sflag, size = 0x8, scoped, tag = 'scoped memory for tpu_custom_call.1']
    %9 = vsyncpa [#allocation3], 0
    %s10 = scalar_lea.sflag [#allocation3], 1
    %11 = vsyncpa %s10, 0
    loop: start=0, step=1, limit=4
    $region2: #{tpu_custom_call.1} parent=1 // loop_pre_header
      _
    $region3: #{tpu_custom_call.1} parent=1 // loop_header
      %s13 = sphi 0, %s17
      %p14 = scmp.ge.s32.totalorder %s13, 4
      %s23 = sphi 0, %s25
      %s26 = sphi 0, %s23
      %s27 = sphi 0, %s26
      %s43 = sphi 0, %s27
      %s49 = sphi 0, %s51
      %s52 = sphi 0, %s49
      %s53 = sphi 0, %s52
      %s69 = sphi 0, %s53
      %s73 = sphi 0, %s73
      %s75 = sphi 0, %s73
      %s76 = sphi 0, %s75
      %s90 = sphi 0, %s76
      %s94 = sphi 0, %s94
      %s96 = sphi 0, %s94
      %s97 = sphi 0, %s96
      %s111 = sphi 0, %s97
      %s117 = sphi 0, %s119
      %s120 = sphi 0, %s117
      %s121 = sphi 0, %s120
      %s137 = sphi 0, %s121
    $region4: #{tpu_custom_call.1} parent=1 // loop_header_branch
      %16 = sbr.rel (%p14) target = $region8
    $region5: #{tpu_custom_call.1} parent=1 // loop_body
      %s18 = ssub.s32 %s13, 1
      %s19 = ssub.s32 %s13, 2
      %s20 = sadd.s32 %s13, 1
      %s21 = ssub.s32 %s13, %s20
      %p22 = scmp.eq.s32.totalorder %s21, 0
      %s24 = sadd.s32 %s23, 1
      %s25 = scalar_select %p22, %s23, %s24
      %p28 = pneg %p22
      %p29 = scmp.eq.s32.totalorder %s13, 1
      %p30 = por %p28, %p29
      %p31 = scmp.ne.s32.totalorder %s23, %s26
      %p32 = scmp.eq.s32.totalorder %s13, 0
      %p33 = por %p31, %p32
      %p34 = scmp.ne.s32.totalorder %s23, %s26
      %p35 = scmp.eq.s32.totalorder %s18, 1
      %p36 = por %p34, %p35
      %p37 = scmp.ne.s32.totalorder %s26, %s27
      %p38 = scmp.eq.s32.totalorder %s18, 0
      %p39 = por %p37, %p38
      %p40 = scmp.ne.s32.totalorder %s26, %s27
      %p41 = scmp.eq.s32.totalorder %s19, 1
      %p42 = por %p40, %p41
      %p44 = scmp.ne.s32.totalorder %s27, %s43
      %p45 = scmp.eq.s32.totalorder %s19, 0
      %p46 = por %p44, %p45
      %s47 = ssub.s32 %s13, %s20
      %p48 = scmp.eq.s32.totalorder %s47, 0
      %s50 = sadd.s32 %s49, 1
      %s51 = scalar_select %p48, %s49, %s50
      %p54 = pneg %p48
      %p55 = scmp.eq.s32.totalorder %s13, 1
      %p56 = por %p54, %p55
      %p57 = scmp.ne.s32.totalorder %s49, %s52
      %p58 = scmp.eq.s32.totalorder %s13, 0
      %p59 = por %p57, %p58
      %p60 = scmp.ne.s32.totalorder %s49, %s52
      %p61 = scmp.eq.s32.totalorder %s18, 1
      %p62 = por %p60, %p61
      %p63 = scmp.ne.s32.totalorder %s52, %s53
      %p64 = scmp.eq.s32.totalorder %s18, 0
      %p65 = por %p63, %p64
      %p66 = scmp.ne.s32.totalorder %s52, %s53
      %p67 = scmp.eq.s32.totalorder %s19, 1
      %p68 = por %p66, %p67
      %p70 = scmp.ne.s32.totalorder %s53, %s69
      %p71 = scmp.eq.s32.totalorder %s19, 0
      %p72 = por %p70, %p71
      %s74 = sadd.s32 %s73, 1
      %p77 = scmp.eq.s32.totalorder %s13, 1
      %p78 = scmp.ne.s32.totalorder %s73, %s75
      %p79 = scmp.eq.s32.totalorder %s13, 0
      %p80 = por %p78, %p79
      %p81 = scmp.ne.s32.totalorder %s73, %s75
      %p82 = scmp.eq.s32.totalorder %s18, 1
      %p83 = por %p81, %p82
      %p84 = scmp.ne.s32.totalorder %s75, %s76
      %p85 = scmp.eq.s32.totalorder %s18, 0
      %p86 = por %p84, %p85
      %p87 = scmp.ne.s32.totalorder %s75, %s76
      %p88 = scmp.eq.s32.totalorder %s19, 1
      %p89 = por %p87, %p88
      %p91 = scmp.ne.s32.totalorder %s76, %s90
      %p92 = scmp.eq.s32.totalorder %s19, 0
      %p93 = por %p91, %p92
      %s95 = sadd.s32 %s94, 1
      %p98 = scmp.eq.s32.totalorder %s13, 1
      %p99 = scmp.ne.s32.totalorder %s94, %s96
      %p100 = scmp.eq.s32.totalorder %s13, 0
      %p101 = por %p99, %p100
      %p102 = scmp.ne.s32.totalorder %s94, %s96
      %p103 = scmp.eq.s32.totalorder %s18, 1
      %p104 = por %p102, %p103
      %p105 = scmp.ne.s32.totalorder %s96, %s97
      %p106 = scmp.eq.s32.totalorder %s18, 0
      %p107 = por %p105, %p106
      %p108 = scmp.ne.s32.totalorder %s96, %s97
      %p109 = scmp.eq.s32.totalorder %s19, 1
      %p110 = por %p108, %p109
      %p112 = scmp.ne.s32.totalorder %s97, %s111
      %p113 = scmp.eq.s32.totalorder %s19, 0
      %p114 = por %p112, %p113
      %s115 = ssub.s32 %s13, %s20
      %p116 = scmp.eq.s32.totalorder %s115, 0
      %s118 = sadd.s32 %s117, 1
      %s119 = scalar_select %p116, %s117, %s118
      %p122 = pneg %p116
      %p123 = scmp.eq.s32.totalorder %s13, 1
      %p124 = por %p122, %p123
      %p125 = scmp.ne.s32.totalorder %s117, %s120
      %p126 = scmp.eq.s32.totalorder %s13, 0
      %p127 = por %p125, %p126
      %p128 = scmp.ne.s32.totalorder %s117, %s120
      %p129 = scmp.eq.s32.totalorder %s18, 1
      %p130 = por %p128, %p129
      %p131 = scmp.ne.s32.totalorder %s120, %s121
      %p132 = scmp.eq.s32.totalorder %s18, 0
      %p133 = por %p131, %p132
      %p134 = scmp.ne.s32.totalorder %s120, %s121
      %p135 = scmp.eq.s32.totalorder %s19, 1
      %p136 = por %p134, %p135
      %p138 = scmp.ne.s32.totalorder %s121, %s137
      %p139 = scmp.eq.s32.totalorder %s19, 0
      %p140 = por %p138, %p139
      %p141 = scmp.le.s32.totalorder 1, %s13
      %p142 = scmp.lt.s32.totalorder %s13, 3
      %p143 = pnand %p141, %p142
      %p144 = pneg %p143
      // Predicated region
      $region9: #{tpu_custom_call.1} parent=5 // pred_check
        _
      $region10: #{tpu_custom_call.1} parent=5 // pred_check_branch
        %146 = sbr.rel (%p143) target = $region12
      $region11: #{tpu_custom_call.1} parent=5 // pred_region
        %s147 = ssub.s32 %s13, 1
        // Predicated region
        $region13: #{tpu_custom_call.1} parent=11 // pred_check
          %p148 = pneg %p86
        $region14: #{tpu_custom_call.1} parent=11 // pred_check_branch
          %150 = sbr.rel (%p148) target = $region16
        $region15: #{tpu_custom_call.1} parent=11 // pred_region
          _
        $region16: #{tpu_custom_call.1} parent=11 // pred_fallthru
          _
        // Predicated region
        $region17: #{tpu_custom_call.1} parent=11 // pred_check
          %p151 = pneg %p107
        $region18: #{tpu_custom_call.1} parent=11 // pred_check_branch
          %153 = sbr.rel (%p151) target = $region20
        $region19: #{tpu_custom_call.1} parent=11 // pred_region
          _
        $region20: #{tpu_custom_call.1} parent=11 // pred_fallthru
          _
      $region12: #{tpu_custom_call.1} parent=5 // pred_fallthru
        _
      %p154 = scmp.lt.s32.totalorder %s13, 2
      // Predicated region
      $region21: #{tpu_custom_call.1} parent=5 // pred_check
        %p155 = pneg %p154
      $region22: #{tpu_custom_call.1} parent=5 // pred_check_branch
        %157 = sbr.rel (%p155) target = $region24
      $region23: #{tpu_custom_call.1} parent=5 // pred_region
        // Predicated region
        $region25: #{tpu_custom_call.1} parent=23 // pred_check
          %p158 = pneg %p33
        $region26: #{tpu_custom_call.1} parent=23 // pred_check_branch
          %160 = sbr.rel (%p158) target = $region28
        $region27: #{tpu_custom_call.1} parent=23 // pred_region
          %p161 = scmp.lt.s32.totalorder %s13, 1
          %s162 = scalar_select %p161, %s13, 1
          %s163 = smul.addr %s162, 2
          %s164 = smul.addr %s163, 4
          %s165 = scalar_lea.vmem %s0, %s164
        $region28: #{tpu_custom_call.1} parent=23 // pred_fallthru
          _
        // Predicated region
        $region29: #{tpu_custom_call.1} parent=23 // pred_check
          %p166 = pneg %p59
        $region30: #{tpu_custom_call.1} parent=23 // pred_check_branch
          %168 = sbr.rel (%p166) target = $region32
        $region31: #{tpu_custom_call.1} parent=23 // pred_region
          %p169 = scmp.lt.s32.totalorder %s13, 1
          %s170 = scalar_select %p169, %s13, 1
          %s171 = smul.addr %s170, 2
          %s172 = smul.addr %s171, 8
          %s173 = scalar_lea.vmem %s1, %s172
        $region32: #{tpu_custom_call.1} parent=23 // pred_fallthru
          _
      $region24: #{tpu_custom_call.1} parent=5 // pred_fallthru
        _
      %p174 = scmp.le.s32.totalorder 1, %s13
      %p175 = scmp.lt.s32.totalorder %s13, 3
      %p176 = pnand %p174, %p175
      %p177 = pneg %p176
      // Predicated region
      $region33: #{tpu_custom_call.1} parent=5 // pred_check
        _
      $region34: #{tpu_custom_call.1} parent=5 // pred_check_branch
        %179 = sbr.rel (%p176) target = $region36
      $region35: #{tpu_custom_call.1} parent=5 // pred_region
        %s180 = ssub.s32 %s13, 1
        %p181 = scmp.lt.s32.totalorder %s18, 1
        %s182 = scalar_select %p181, %s18, 1
        %s183 = smul.addr %s182, 2
        %s184 = smul.addr %s183, 4
        %s185 = scalar_lea.vmem %s0, %s184
        %p186 = pneg %p39
        %p187 = pneg %p36
        %p188 = scmp.lt.s32.totalorder %s18, 1
        %s189 = scalar_select %p188, %s18, 1
        %s190 = smul.addr %s189, 2
        %s191 = smul.addr %s190, 8
        %s192 = scalar_lea.vmem %s1, %s191
        %p193 = pneg %p65
        %p194 = pneg %p62
        %p195 = pneg %p86
        %p196 = pneg %p83
        %p197 = pneg %p107
        %p198 = pneg %p104
        %p199 = pneg %p133
        %p200 = pneg %p130
        %s201 = sand.u32 %s120, 1
        %s202 = scalar_lea.sflag [#allocation3], %s201
        %s203 = sand.u32 %s120, 1
        %s204 = smul.addr %s203, 4
        %s205 = scalar_lea.vmem [#allocation2], %s204
        %p206 = scmp.lt.s32.totalorder %s18, 1
        %s207 = scalar_select %p206, %s18, 1
        %s208 = smul.addr %s207, 2
        %s209 = smul.addr %s208, 4
        %s210 = scalar_lea.vmem %s0, %s209
        %p211 = scmp.lt.s32.totalorder %s18, 1
        %s212 = scalar_select %p211, %s18, 1
        %s213 = smul.addr %s212, 2
        %s214 = smul.addr %s213, 8
        %s215 = scalar_lea.vmem %s1, %s214
        %v217 = vld [vmem:[%s215] sm:$0xff]
        %v218 = vld [vmem:[%s215 + $0x8] sm:$0xff]
        %vm219 = vcmask 64512
        %v221 = vsel %vm219, %v217, 0
        %v224 = vsel %vm219, %v218, 0
        %226 = vmatpush.xpose.msra.mxu0 0.0
        %227 = vmatpush.xpose.msra.mxu0 0.0
        %228 = vmatpush.xpose.msra.mxu0 0.0
        %229 = vmatpush.xpose.msra.mxu0 0.0
        %230 = vmatpush.xpose.msra.mxu0 0.0
        %231 = vmatpush.xpose.msra.mxu0 0.0
        %232 = vmatpush.xpose.msra.mxu0 0.0
        %233 = vmatpush.xpose.msra.mxu0 0.0
        %234 = vmatpush.xpose.msra.mxu0 0.0
        %235 = vmatpush.xpose.msra.mxu0 0.0
        %236 = vmatpush.xpose.msra.mxu0 0.0
        %237 = vmatpush.xpose.msra.mxu0 0.0
        %238 = vmatpush.xpose.msra.mxu0 0.0
        %239 = vmatpush.xpose.msra.mxu0 0.0
        %240 = vmatpush.xpose.msra.mxu0 %v224
        %241 = vmatpush.xpose.msra.mxu0 %v221
        %242 = vmatmul.f32.gmra.mxu0 %v221
        %v243 = vpop.f32.mrf.mxu0
        %v244 = vadd.f32 0.0, %v243
        %245 = vmatmul.f32.gmra.mxu0 %v224
        %v246 = vpop.f32.mrf.mxu0
        %v247 = vadd.f32 0.0, %v246
        %248 = vdwg.mxu0
        %v249 = vmax.f32 %v244, 0.0
        %v250 = vmax.f32 %v247, 0.0
        %vm251 = vcmask 130048
        %v252 = vsel %vm251, %v249, -inf
        %253 = vmax.xlane.f32.xlu0 %v252
        %v254 = vpop.xlane.xlu0 %253
        %v255 = vsel %vm251, %v250, -inf
        %256 = vmax.xlane.f32.xlu0 %v255
        %v257 = vpop.xlane.xlu0 %256
        %v258 = vsub.f32 %v249, %v254
        %v259 = vsub.f32 %v250, %v257
        %v260 = vmul.f32 %v258, 1.442695
        %v261 = vpow.pop %v260
        %v262 = vmul.f32 %v259, 1.442695
        %v263 = vpow.pop %v262
        %v264 = vsel %vm251, %v261, 0.0
        %265 = vadd.xlane.f32.xlu0 %v264
        %v266 = vpop.xlane.xlu0 %265
        %v267 = vsel %vm251, %v263, 0.0
        %268 = vadd.xlane.f32.xlu0 %v267
        %v269 = vpop.xlane.xlu0 %268
        %v270 = vpack.c.bf16 %v261, %v261
        %v271 = vpack.c.bf16 %v263, %v263
        %v272 = vld [vmem:[%s210] sm:$0xf]
        %v273 = vld [vmem:[%s210 + $0x4] sm:$0xf]
        %v274 = vld [vmem:[%s2] sm:$0xf]
        %v275 = vld [vmem:[%s2 + $0x4] sm:$0xf]
        %v276 = vld [vmem:[%s2 + $0x8] sm:$0xf]
        %v277 = vld [vmem:[%s2 + $0xc] sm:$0xf]
        %v280 = vunpack.c.l.b16 %v272
        %v281 = vunpack.c.l.b16 %v273
        %v282 = vpack.c.b16 %v281, %v280
        %v287 = vunpack.c.l.b16 %v274
        %v288 = vunpack.c.l.b16 %v275
        %v289 = vunpack.c.l.b16 %v276
        %v290 = vunpack.c.l.b16 %v277
        %v291 = vpack.c.b16 %v288, %v287
        %v292 = vpack.c.b16 %v290, %v289
        %vm295 = vcmask 261120
        %v297 = vsel %vm295, %v282, 0
        %299 = vmatpush.bf16.msra.mxu0 0
        %300 = vmatpush.bf16.msra.mxu0 0
        %301 = vmatpush.bf16.msra.mxu0 0
        %302 = vmatpush.bf16.msra.mxu0 0
        %303 = vmatpush.bf16.msra.mxu0 0
        %304 = vmatpush.bf16.msra.mxu0 0
        %305 = vmatpush.bf16.msra.mxu0 %v292
        %306 = vmatpush.bf16.msra.mxu0 %v291
        %307 = vmatmul.bf16.gmra.mxu0 %v297
        %v308 = vpop.f32.mrf.mxu0
        %v309 = vadd.f32 0.0, %v308
        %v310 = vpop.f32.mrf.mxu0
        %v311 = vadd.f32 0.0, %v310
        %312 = vdwg.mxu0
        %v313 = vpack.c.bf16 %v309, %v309
        %v314 = vpack.c.bf16 %v311, %v311
        %v317 = vunpack.c.l.b16 %v270
        %v318 = vunpack.c.l.b16 %v271
        %v319 = vpack.c.b16 %v318, %v317
        %v322 = vunpack.c.l.b16 %v313
        %v323 = vunpack.c.l.b16 %v314
        %v324 = vpack.c.b16 %v323, %v322
        %v327 = vsel %vm251, %v319, 0
        %329 = vmatpush.bf16.msra.mxu0 0
        %330 = vmatpush.bf16.msra.mxu0 0
        %331 = vmatpush.bf16.msra.mxu0 0
        %332 = vmatpush.bf16.msra.mxu0 0
        %333 = vmatpush.bf16.msra.mxu0 0
        %334 = vmatpush.bf16.msra.mxu0 0
        %335 = vmatpush.bf16.msra.mxu0 0
        %336 = vmatpush.bf16.msra.mxu0 %v324
        %337 = vmatmul.bf16.gmra.mxu0 %v327
        %v338 = vpop.f32.mrf.mxu0
        %v339 = vadd.f32 0.0, %v338
        %v340 = vpop.f32.mrf.mxu0
        %v341 = vadd.f32 0.0, %v340
        %342 = vdwg.mxu0
        %v343 = vrcp.pop %v266
        %v344 = vrcp.pop %v269
        %v345 = vmul.f32 %v339, %v343
        %v346 = vmul.f32 %v341, %v344
        %v347 = vadd.f32 %v309, %v345
        %v348 = vadd.f32 %v311, %v346
        %v349 = vld [vmem:[%s3] sm:$0x1]
        %v351 = vperm.slane %v349, 0
        %v353 = vadd.f32 %v347, %v351
        %v354 = vadd.f32 %v348, %v351
        %v355 = vrot.slane %v353, 4
        %vm356 = vcmask 1047556
        %v357 = vsel %vm356, 0.0, %v355
        %v359 = vunpack.c.l.s4 1983009808
        %v360 = vunpack.c.0.s8 %v359
        %v361 = vperm.slane %v353, %v360
        %v363 = vunpack.c.l.s4 1983009808
        %v364 = vunpack.c.0.s8 %v363
        %v365 = vperm.slane %v357, %v364
        %v366 = vrot.slane %v361, 4
        %v367 = vsel %vm356, 0.0, %v366
        %v369 = vunpack.c.l.s4 1934713408
        %v370 = vunpack.c.0.s8 %v369
        %v371 = vperm.slane %v361, %v370
        %v373 = vunpack.c.l.s4 1934713408
        %v374 = vunpack.c.0.s8 %v373
        %v375 = vperm.slane %v367, %v374
        %v376 = vrot.slane %v365, 4
        %v377 = vsel %vm356, 0.0, %v376
        %v379 = vunpack.c.l.s4 1934713408
        %v380 = vunpack.c.0.s8 %v379
        %v381 = vperm.slane %v365, %v380
        %v383 = vunpack.c.l.s4 1934713408
        %v384 = vunpack.c.0.s8 %v383
        %v385 = vperm.slane %v377, %v384
        %v386 = vrot.slane %v371, 4
        %v387 = vsel %vm356, 0.0, %v386
        %v388 = vrot.slane %v375, 4
        %v389 = vsel %vm356, 0.0, %v388
        %v390 = vrot.slane %v381, 4
        %v391 = vsel %vm356, 0.0, %v390
        %v392 = vrot.slane %v385, 4
        %v393 = vsel %vm356, 0.0, %v392
        %v394 = vrot.slane %v354, 4
        %v395 = vsel %vm356, 0.0, %v394
        %v397 = vunpack.c.l.s4 1983009808
        %v398 = vunpack.c.0.s8 %v397
        %v399 = vperm.slane %v354, %v398
        %v401 = vunpack.c.l.s4 1983009808
        %v402 = vunpack.c.0.s8 %v401
        %v403 = vperm.slane %v395, %v402
        %v404 = vrot.slane %v399, 4
        %v405 = vsel %vm356, 0.0, %v404
        %v407 = vunpack.c.l.s4 1934713408
        %v408 = vunpack.c.0.s8 %v407
        %v409 = vperm.slane %v399, %v408
        %v411 = vunpack.c.l.s4 1934713408
        %v412 = vunpack.c.0.s8 %v411
        %v413 = vperm.slane %v405, %v412
        %v414 = vrot.slane %v403, 4
        %v415 = vsel %vm356, 0.0, %v414
        %v417 = vunpack.c.l.s4 1934713408
        %v418 = vunpack.c.0.s8 %v417
        %v419 = vperm.slane %v403, %v418
        %v421 = vunpack.c.l.s4 1934713408
        %v422 = vunpack.c.0.s8 %v421
        %v423 = vperm.slane %v415, %v422
        %v424 = vrot.slane %v409, 4
        %v425 = vsel %vm356, 0.0, %v424
        %v426 = vrot.slane %v413, 4
        %v427 = vsel %vm356, 0.0, %v426
        %v428 = vrot.slane %v419, 4
        %v429 = vsel %vm356, 0.0, %v428
        %v430 = vrot.slane %v423, 4
        %v431 = vsel %vm356, 0.0, %v430
        %433 = vrot.lane.b32.xlu0 %v387, 32
        %v434 = vpop.permute.xlu0 %433
        %437 = vrot.lane.b32.xlu0 %v375, 64
        %v438 = vpop.permute.xlu0 %437
        %441 = vrot.lane.b32.xlu0 %v389, 96
        %v442 = vpop.permute.xlu0 %441
        %445 = vrot.lane.b32.xlu0 %v391, 32
        %v446 = vpop.permute.xlu0 %445
        %449 = vrot.lane.b32.xlu0 %v385, 64
        %v450 = vpop.permute.xlu0 %449
        %453 = vrot.lane.b32.xlu0 %v393, 96
        %v454 = vpop.permute.xlu0 %453
        %457 = vrot.lane.b32.xlu0 %v425, 32
        %v458 = vpop.permute.xlu0 %457
        %461 = vrot.lane.b32.xlu0 %v413, 64
        %v462 = vpop.permute.xlu0 %461
        %465 = vrot.lane.b32.xlu0 %v427, 96
        %v466 = vpop.permute.xlu0 %465
        %469 = vrot.lane.b32.xlu0 %v429, 32
        %v470 = vpop.permute.xlu0 %469
        %473 = vrot.lane.b32.xlu0 %v423, 64
        %v474 = vpop.permute.xlu0 %473
        %477 = vrot.lane.b32.xlu0 %v431, 96
        %v478 = vpop.permute.xlu0 %477
        %v480 = vsel %vm295, %v371, %v434
        %vm481 = vcmask 523264
        %v482 = vsel %vm481, %v480, %v438
        %vm483 = vcmask 785408
        %v484 = vsel %vm483, %v482, %v442
        %v485 = vsel %vm295, %v381, %v446
        %v486 = vsel %vm481, %v485, %v450
        %v487 = vsel %vm483, %v486, %v454
        %v488 = vsel %vm295, %v409, %v458
        %v489 = vsel %vm481, %v488, %v462
        %v490 = vsel %vm483, %v489, %v466
        %v491 = vsel %vm295, %v419, %v470
        %v492 = vsel %vm481, %v491, %v474
        %v493 = vsel %vm483, %v492, %v478
        %v498 = vrot.slane %v487, 7
        %v499 = vrot.slane %v490, 6
        %v500 = vrot.slane %v493, 5
        %vm501 = vcmask 1040384
        %v502 = vsel %vm501, %v484, %v498
        %vm503 = vcmask 1042434
        %v504 = vsel %vm503, %v499, %v500
        %vm505 = vcmask 1041408
        %v506 = vsel %vm505, %v502, %v504
        %v508 = vlaneseq
        %vm509 = vcmp.ge.s32.totalorder %v508, 0
        %vm510 = vcmp.lt.s32.totalorder %v508, 512
        %vm511 = vmand %vm509, %vm510
        %512 = vst.msk [vmem:[%s205] sm:$0xf] %vm511, %v506
        %s513 = sand.u32 %s120, 1
        %s514 = scalar_lea.sflag [#allocation3], %s513
        %s515 = sand.u32 %s120, 1
        %s516 = smul.addr %s515, 4
        %s517 = scalar_lea.vmem [#allocation2], %s516
        // Predicated region
        $region37: #{tpu_custom_call.1} parent=35 // pred_check
          %p518 = pneg %p130
        $region38: #{tpu_custom_call.1} parent=35 // pred_check_branch
          %520 = sbr.rel (%p518) target = $region40
        $region39: #{tpu_custom_call.1} parent=35 // pred_region
          %522 = vsyncadd %s514, 0
          %s523 = smul.addr %s18, 4
          %s524 = scalar_lea.hbm %s4, %s523
          %s526 = sshll.u32 %s517, 4
          %s527 = int_to_ptr.vmem [resolvable:$true] %s526
          %s528 = sshll.u32 %s524, 4
          %s529 = int_to_ptr.hbm [resolvable:$true] %s528
          %531 = dma.vmem_to_hbm [thread:$0]  %s527, 64, %s529, %s514
        $region40: #{tpu_custom_call.1} parent=35 // pred_fallthru
          _
      $region36: #{tpu_custom_call.1} parent=5 // pred_fallthru
        _
      %p532 = scmp.le.s32.totalorder 2, %s13
      // Predicated region
      $region41: #{tpu_custom_call.1} parent=5 // pred_check
        %p533 = pneg %p532
      $region42: #{tpu_custom_call.1} parent=5 // pred_check_branch
        %535 = sbr.rel (%p533) target = $region44
      $region43: #{tpu_custom_call.1} parent=5 // pred_region
        %s536 = ssub.s32 %s13, 2
        // Predicated region
        $region45: #{tpu_custom_call.1} parent=43 // pred_check
          %p537 = pneg %p136
        $region46: #{tpu_custom_call.1} parent=43 // pred_check_branch
          %539 = sbr.rel (%p537) target = $region48
        $region47: #{tpu_custom_call.1} parent=43 // pred_region
          %s540 = sand.u32 %s121, 1
          %s541 = scalar_lea.sflag [#allocation3], %s540
          %s542 = sand.u32 %s121, 1
          %s543 = smul.addr %s542, 4
          %s544 = scalar_lea.vmem [#allocation2], %s543
          %546 = dma.done %s541, 64
        $region48: #{tpu_custom_call.1} parent=43 // pred_fallthru
          _
      $region44: #{tpu_custom_call.1} parent=5 // pred_fallthru
        _
    $region6: #{tpu_custom_call.1} parent=1 // loop_footer
      %s17 = sadd.s32 1, %s13
    $region7: #{tpu_custom_call.1} parent=1 // loop_footer_branch
      %12 = sbr.rel target = $region3
    $region8: #{tpu_custom_call.1} parent=1 // loop_exit
      _
    %547 = vsyncpa [#allocation3], 1
    %s548 = scalar_lea.sflag [#allocation3], 1
    %549 = vsyncpa %s548, 1

</llo_original>
